<compile_context>
chip_gen: v7x
topology: tpu7x:2x2x1
jax: 0.10.0
libtpu: 0.0.40
codegen_flags: <defaults>
</compile_context>

<pallas_src>
import functools

import jax
import jax.numpy as jnp
from jax.experimental import pallas as pl
from jax.experimental.pallas import tpu as pltpu

_EPS = 1e-12  # F.normalize default eps


def _somnial_kernel(x_ref, w_ref, b_ref, o_ref, *, use_mxu, c):
    # x_ref: (Bblk, C, TN) tile -- channels on sublanes, flattened pixels on lanes
    # w_ref: (C, C)  1x1-conv weight, W[out, in]
    # b_ref: (C, 1)  conv bias
    x_in = x_ref[...]                           # native dtype (MXU input)
    x = x_in.astype(jnp.float32)                # f32 for all VPU math
    b = b_ref[...].astype(jnp.float32)          # (C, 1)

    if use_mxu:
        # bf16 inputs feed the MXU natively; accumulation stays f32.
        # (Weight is rounded to the activation dtype in the bf16 case.)
        w = w_ref[...].astype(x_in.dtype)
        x_hat = jnp.einsum("oc,bcn->bon", w, x_in,
                           preferred_element_type=jnp.float32) + b[None]
    else:
        # Tiny channel count: MXU pass would be almost entirely padding;
        # statically-unrolled VPU multiply-accumulates are cheaper and exact f32.
        w = w_ref[...].astype(jnp.float32)
        acc = jnp.zeros_like(x) + b[None]
        for ci in range(c):
            acc = acc + w[None, :, ci:ci + 1] * x[:, ci:ci + 1, :]
        x_hat = acc

    # Cosine similarity over channels (sublane reductions). Restructured so the
    # only divide is a single (Bblk, 1, TN) reciprocal.
    sx = jnp.sum(x * x, axis=1, keepdims=True)            # (Bblk, 1, TN)
    sh = jnp.sum(x_hat * x_hat, axis=1, keepdims=True)     # (Bblk, 1, TN)
    sd = jnp.sum(x * x_hat, axis=1, keepdims=True)         # (Bblk, 1, TN)
    den = jnp.maximum(jnp.sqrt(sx), _EPS) * jnp.maximum(jnp.sqrt(sh), _EPS)
    cos = sd * pl.reciprocal(den, approx=False)
    m = jax.nn.sigmoid(cos)                                # broadcast over C

    # out = m*x_hat + (1-m)*x  ==  x + m*(x_hat - x): one fewer full-tile multiply.
    o_ref[...] = (x + m * (x_hat - x)).astype(o_ref.dtype)


@functools.lru_cache(maxsize=None)
def _chip_defaults():
    """Generation-aware sizing; falls back to safe v5e/v6e-class numbers."""
    vmem = 128 * 1024 * 1024
    try:
        vmem = int(pltpu.get_tpu_info().vmem_capacity_bytes)
    except Exception:  # interpret mode / older jax / exotic backend
        pass
    if vmem <= 64 * 1024 * 1024:
        # v7x-class: 64 MiB VMEM per TensorCore, ~1.6 TB/s HBM per core ->
        # bigger per-step DMAs, tighter VMEM ceiling, 256-wide MXU.
        return dict(target_x_bytes=4 << 20, vmem_budget=36 << 20,
                    vmem_limit=52 << 20, mxu_crossover=64)
    # v5e / v6e: 128 MiB physical VMEM; raise the scoped limit explicitly.
    return dict(target_x_bytes=2 << 20, vmem_budget=40 << 20,
                vmem_limit=64 << 20, mxu_crossover=32)


def _pick_blocks(B, C, HW, dtype_bytes, params):
    """Pick (batch_block, spatial_tile) sized by bytes-per-step, not lane count."""
    hw_pad = ((HW + 127) // 128) * 128
    # Live-VMEM estimate per lane column of a tile: double-buffered dtype-sized
    # input + output tiles plus ~6 f32 full-tile temporaries (dtype-aware).
    per_lane_bytes = C * (4 * dtype_bytes + 6 * 4)
    cap_lanes = max(128, (params["vmem_budget"] // per_lane_bytes) // 128 * 128)
    # Lanes needed to hit the per-step DMA byte target (~1-4 MiB of x).
    tgt_lanes = max(128, (params["target_x_bytes"] // (C * dtype_bytes)) // 128 * 128)
    tile_hw = min(hw_pad, tgt_lanes, cap_lanes)

    bblk = 1
    if tile_hw >= hw_pad:
        # Whole spatial extent fits in one tile but the step is still small:
        # pack several batch rows per step so the DMA stays MiB-sized.
        want = max(1, min(tgt_lanes // hw_pad, cap_lanes // hw_pad))
        bblk = max(1, min(B, want))
        if bblk >= B and B >= 2:
            bblk = (B + 1) // 2   # keep >= 2 grid steps so both v7x cores work
    return bblk, tile_hw


@jax.jit
def somnial_unit(x_nchw, weight, bias):
    """Eval-mode SomnialUnit forward. x: (B, C, H, W); weight: (C, C); bias: (C,)."""
    B, C, H, W = x_nchw.shape
    HW = H * W
    params = _chip_defaults()

    # NCHW kept in place: flattening H*W is a free contiguous reshape -> no
    # transpose / pad HBM passes around the kernel.
    x3 = x_nchw.reshape(B, C, HW)
    bias2d = bias.reshape(C, 1)

    dtype_bytes = jnp.dtype(x_nchw.dtype).itemsize
    bblk, tile_hw = _pick_blocks(B, C, HW, dtype_bytes, params)
    grid = (pl.cdiv(B, bblk), pl.cdiv(HW, tile_hw))   # ragged blocks handled by Pallas

    kernel = functools.partial(_somnial_kernel,
                               use_mxu=(C >= params["mxu_crossover"]), c=C)

    out3 = pl.pallas_call(
        kernel,
        out_shape=jax.ShapeDtypeStruct((B, C, HW), x_nchw.dtype),
        grid_spec=pltpu.PrefetchScalarGridSpec(
            num_scalar_prefetch=0,
            grid=grid,
            in_specs=[
                pl.BlockSpec((bblk, C, tile_hw), lambda i, j: (i, 0, j)),  # x tile
                pl.BlockSpec((C, C), lambda i, j: (0, 0)),                 # weight
                pl.BlockSpec((C, 1), lambda i, j: (0, 0)),                 # bias
            ],
            out_specs=pl.BlockSpec((bblk, C, tile_hw), lambda i, j: (i, 0, j)),
        ),
        compiler_params=pltpu.CompilerParams(
            # Both grid axes are independent pixels/batches -> megacore-shardable.
            dimension_semantics=("parallel", "parallel"),
            vmem_limit_bytes=params["vmem_limit"],
        ),
    )(x3, weight, bias2d)

    return out3.reshape(B, C, H, W)


def _reference(x_nchw, weight, bias):
    """Pure-JAX reference of the eval-mode forward (for sanity check)."""
    x = x_nchw.astype(jnp.float32)
    x_hat = jnp.einsum("bchw,oc->bohw", x, weight.astype(jnp.float32),
                       precision=jax.lax.Precision.HIGHEST) \
        + bias.astype(jnp.float32)[None, :, None, None]
    qn = jnp.maximum(jnp.linalg.norm(x, axis=1, keepdims=True), _EPS)
    kn = jnp.maximum(jnp.linalg.norm(x_hat, axis=1, keepdims=True), _EPS)
    cos = jnp.sum((x / qn) * (x_hat / kn), axis=1, keepdims=True)
    m = jax.nn.sigmoid(cos)
    return (m * x_hat + (1.0 - m) * x).astype(x_nchw.dtype)


if __name__ == "__main__":
    B, C, H, W = 2, 4, 16, 16

    key = jax.random.PRNGKey(0)
    kx, kw, kb = jax.random.split(key, 3)

    x = jax.random.normal(kx, (B, C, H, W), dtype=jnp.float32)
    # Deterministic init mimicking Conv2d default (uniform in +-1/sqrt(fan_in))
    bound = 1.0 / jnp.sqrt(jnp.float32(C))
    weight = jax.random.uniform(kw, (C, C), minval=-bound, maxval=bound,
                                dtype=jnp.float32)
    bias = jax.random.uniform(kb, (C,), minval=-bound, maxval=bound,
                              dtype=jnp.float32)

    out = somnial_unit(x, weight, bias)
    out = jax.block_until_ready(out)

    ref = _reference(x, weight, bias)
    assert out.shape == (B, C, H, W)
    assert jnp.allclose(out, ref, atol=1e-5, rtol=1e-5), \
        f"max err {jnp.max(jnp.abs(out - ref))}"

    print("KERNEL_OK")
</pallas_src>

<mosaic_0001>
module attributes {stable_mosaic.version = 11 : i64} {
  func.func @_somnial_kernel(%arg0: i32, %arg1: i32, %arg2: memref<1x4x256xf32, #tpu.memory_space<vmem>>, %arg3: memref<4x4xf32, #tpu.memory_space<vmem>>, %arg4: memref<4x1xf32, #tpu.memory_space<vmem>>, %arg5: memref<1x4x256xf32, #tpu.memory_space<vmem>>) attributes {dimension_semantics = [#tpu.dimension_semantics<parallel>, #tpu.dimension_semantics<parallel>], iteration_bounds = array<i64: 2, 1>, scalar_prefetch = 0 : i64, scratch_operands = 0 : i64, tpu.core_type = #tpu.core_type<tc>, window_params = [{transform_indices = @transform_0, window_bounds = array<i64: 1, 4, 256>}, {pipeline_mode = #tpu.pipeline_mode<synchronous>, transform_indices = @transform_1, window_bounds = array<i64: 4, 4>}, {pipeline_mode = #tpu.pipeline_mode<synchronous>, transform_indices = @transform_2, window_bounds = array<i64: 4, 1>}, {transform_indices = @transform_3, window_bounds = array<i64: 1, 4, 256>}]} {
    %c0 = arith.constant 0 : index
    %c0_0 = arith.constant 0 : index
    %c0_1 = arith.constant 0 : index
    %0 = vector.load %arg2[%c0, %c0_0, %c0_1] : memref<1x4x256xf32, #tpu.memory_space<vmem>>, vector<1x4x256xf32>
    %c0_2 = arith.constant 0 : index
    %c0_3 = arith.constant 0 : index
    %1 = vector.load %arg4[%c0_2, %c0_3] : memref<4x1xf32, #tpu.memory_space<vmem>>, vector<4x1xf32>
    %c0_4 = arith.constant 0 : index
    %c0_5 = arith.constant 0 : index
    %2 = vector.load %arg3[%c0_4, %c0_5] : memref<4x4xf32, #tpu.memory_space<vmem>>, vector<4x4xf32>
    %cst = arith.constant 0.000000e+00 : f32
    %3 = vector.broadcast %cst : f32 to vector<1x4x256xf32>
    %4 = vector.shape_cast %1 : vector<4x1xf32> to vector<1x4x1xf32>
    %5 = vector.broadcast %4 : vector<1x4x1xf32> to vector<1x4x256xf32>
    %6 = arith.addf %3, %5 : vector<1x4x256xf32>
    %7 = vector.extract_strided_slice %2 {offsets = [0, 0], sizes = [4, 1], strides = [1, 1]} : vector<4x4xf32> to vector<4x1xf32>
    %8 = vector.shape_cast %7 : vector<4x1xf32> to vector<1x4x1xf32>
    %9 = vector.extract_strided_slice %0 {offsets = [0, 0, 0], sizes = [1, 1, 256], strides = [1, 1, 1]} : vector<1x4x256xf32> to vector<1x1x256xf32>
    %10 = vector.broadcast %8 : vector<1x4x1xf32> to vector<1x4x256xf32>
    %11 = vector.broadcast %9 : vector<1x1x256xf32> to vector<1x4x256xf32>
    %12 = arith.mulf %10, %11 : vector<1x4x256xf32>
    %13 = arith.addf %6, %12 : vector<1x4x256xf32>
    %14 = vector.extract_strided_slice %2 {offsets = [0, 1], sizes = [4, 1], strides = [1, 1]} : vector<4x4xf32> to vector<4x1xf32>
    %15 = vector.shape_cast %14 : vector<4x1xf32> to vector<1x4x1xf32>
    %16 = vector.extract_strided_slice %0 {offsets = [0, 1, 0], sizes = [1, 1, 256], strides = [1, 1, 1]} : vector<1x4x256xf32> to vector<1x1x256xf32>
    %17 = vector.broadcast %15 : vector<1x4x1xf32> to vector<1x4x256xf32>
    %18 = vector.broadcast %16 : vector<1x1x256xf32> to vector<1x4x256xf32>
    %19 = arith.mulf %17, %18 : vector<1x4x256xf32>
    %20 = arith.addf %13, %19 : vector<1x4x256xf32>
    %21 = vector.extract_strided_slice %2 {offsets = [0, 2], sizes = [4, 1], strides = [1, 1]} : vector<4x4xf32> to vector<4x1xf32>
    %22 = vector.shape_cast %21 : vector<4x1xf32> to vector<1x4x1xf32>
    %23 = vector.extract_strided_slice %0 {offsets = [0, 2, 0], sizes = [1, 1, 256], strides = [1, 1, 1]} : vector<1x4x256xf32> to vector<1x1x256xf32>
    %24 = vector.broadcast %22 : vector<1x4x1xf32> to vector<1x4x256xf32>
    %25 = vector.broadcast %23 : vector<1x1x256xf32> to vector<1x4x256xf32>
    %26 = arith.mulf %24, %25 : vector<1x4x256xf32>
    %27 = arith.addf %20, %26 : vector<1x4x256xf32>
    %28 = vector.extract_strided_slice %2 {offsets = [0, 3], sizes = [4, 1], strides = [1, 1]} : vector<4x4xf32> to vector<4x1xf32>
    %29 = vector.shape_cast %28 : vector<4x1xf32> to vector<1x4x1xf32>
    %30 = vector.extract_strided_slice %0 {offsets = [0, 3, 0], sizes = [1, 1, 256], strides = [1, 1, 1]} : vector<1x4x256xf32> to vector<1x1x256xf32>
    %31 = vector.broadcast %29 : vector<1x4x1xf32> to vector<1x4x256xf32>
    %32 = vector.broadcast %30 : vector<1x1x256xf32> to vector<1x4x256xf32>
    %33 = arith.mulf %31, %32 : vector<1x4x256xf32>
    %34 = arith.addf %27, %33 : vector<1x4x256xf32>
    %35 = arith.mulf %0, %0 : vector<1x4x256xf32>
    %cst_6 = arith.constant dense<0.000000e+00> : vector<1x256xf32>
    %36 = vector.multi_reduction <add>, %35, %cst_6 [1] : vector<1x4x256xf32> to vector<1x256xf32>
    %37 = vector.shape_cast %36 : vector<1x256xf32> to vector<1x1x256xf32>
    %38 = arith.mulf %34, %34 : vector<1x4x256xf32>
    %cst_7 = arith.constant dense<0.000000e+00> : vector<1x256xf32>
    %39 = vector.multi_reduction <add>, %38, %cst_7 [1] : vector<1x4x256xf32> to vector<1x256xf32>
    %40 = vector.shape_cast %39 : vector<1x256xf32> to vector<1x1x256xf32>
    %41 = arith.mulf %0, %34 : vector<1x4x256xf32>
    %cst_8 = arith.constant dense<0.000000e+00> : vector<1x256xf32>
    %42 = vector.multi_reduction <add>, %41, %cst_8 [1] : vector<1x4x256xf32> to vector<1x256xf32>
    %43 = vector.shape_cast %42 : vector<1x256xf32> to vector<1x1x256xf32>
    %44 = math.sqrt %37 : vector<1x1x256xf32>
    %cst_9 = arith.constant 9.99999996E-13 : f32
    %45 = vector.broadcast %cst_9 : f32 to vector<1x1x256xf32>
    %46 = arith.maximumf %44, %45 : vector<1x1x256xf32>
    %47 = math.sqrt %40 : vector<1x1x256xf32>
    %cst_10 = arith.constant 9.99999996E-13 : f32
    %48 = vector.broadcast %cst_10 : f32 to vector<1x1x256xf32>
    %49 = arith.maximumf %47, %48 : vector<1x1x256xf32>
    %50 = arith.mulf %46, %49 : vector<1x1x256xf32>
    %51 = tpu.reciprocal %50 : vector<1x1x256xf32> -> vector<1x1x256xf32>
    %52 = arith.mulf %43, %51 : vector<1x1x256xf32>
    %53 = arith.negf %52 : vector<1x1x256xf32>
    %54 = math.exp %53 : vector<1x1x256xf32>
    %cst_11 = arith.constant 1.000000e+00 : f32
    %55 = vector.broadcast %cst_11 : f32 to vector<1x1x256xf32>
    %56 = arith.addf %55, %54 : vector<1x1x256xf32>
    %57 = arith.divf %55, %56 : vector<1x1x256xf32>
    %58 = arith.subf %34, %0 : vector<1x4x256xf32>
    %59 = vector.broadcast %57 : vector<1x1x256xf32> to vector<1x4x256xf32>
    %60 = arith.mulf %59, %58 : vector<1x4x256xf32>
    %61 = arith.addf %0, %60 : vector<1x4x256xf32>
    %c0_12 = arith.constant 0 : index
    %c0_13 = arith.constant 0 : index
    %c0_14 = arith.constant 0 : index
    %62 = vector.load %arg5[%c0_12, %c0_13, %c0_14] : memref<1x4x256xf32, #tpu.memory_space<vmem>>, vector<1x4x256xf32>
    tpu.vector_store %arg5[%c0_12, %c0_13, %c0_14], %61 {strides = array<i32>} : memref<1x4x256xf32, #tpu.memory_space<vmem>>, vector<1x4x256xf32>,
    return
  }
  func.func @transform_0(%arg0: i32, %arg1: i32) -> (i32, i32, i32) {
    %c0_i32 = arith.constant 0 : i32
    %c0_i32_0 = arith.constant 0 : i32
    return %arg0, %c0_i32, %arg1 : i32, i32, i32
  }
  func.func @transform_1(%arg0: i32, %arg1: i32) -> (i32, i32) {
    %c0_i32 = arith.constant 0 : i32
    %c0_i32_0 = arith.constant 0 : i32
    %c0_i32_1 = arith.constant 0 : i32
    return %c0_i32, %c0_i32_0 : i32, i32
  }
  func.func @transform_2(%arg0: i32, %arg1: i32) -> (i32, i32) {
    %c0_i32 = arith.constant 0 : i32
    %c0_i32_0 = arith.constant 0 : i32
    %c0_i32_1 = arith.constant 0 : i32
    return %c0_i32, %c0_i32_0 : i32, i32
  }
  func.func @transform_3(%arg0: i32, %arg1: i32) -> (i32, i32, i32) {
    %c0_i32 = arith.constant 0 : i32
    %c0_i32_0 = arith.constant 0 : i32
    return %arg0, %c0_i32, %arg1 : i32, i32, i32
  }
}

</mosaic_0001>

<llo_original>
// kernel: somnial_unit.1
$region0: #{somnial_unit.1}
  #allocation0 [shape = 'u32[]', space=smem, size = 0x4, offset = 0x4, fixed_abs, tag = 'smem constant byte address 0x4 - core index']
  #allocation1 [shape = 'u32[144,128]{1,0:T(1,128)}', space=vmem, size = 0x12000, scoped, tag = 'internal scratch']
  %s0 = inlined_call_operand.hbm [shape: f32[2,4,256], index: 0, kind: input, shape index: {}]
  %s1 = inlined_call_operand.hbm [shape: f32[4,4], index: 1, kind: input, shape index: {}]
  %s2 = inlined_call_operand.hbm [shape: f32[4,1], index: 2, kind: input, shape index: {}]
  %s3 = inlined_call_operand.hbm [shape: f32[2,4,256], index: 3, kind: output, shape index: {}]
  %s4 = sld [smem:[#allocation0]]
  $region57: #{somnial_unit.1} parent=0
    _
  %s6 = ssub.s32 1, %s4
  %s7 = scalar_select 0, %s6, %s4
  $region1: #{somnial_unit.1} parent=0
    #allocation2 [shape = 'u8[8192]{0}', space=vmem, size = 0x2000, scoped, tag = 'input window, operand 0']
    #allocation3 [shape = 's32[2]{0}', space=sflag, size = 0x8, scoped, tag = 'scoped memory for somnial_unit.1']
    #allocation4 [shape = 's32[2]{0}', space=sflag, size = 0x8, scoped, tag = 'scoped memory for somnial_unit.1']
    #allocation5 [shape = 'u8[2048]{0}', space=vmem, size = 0x800, scoped, tag = 'input window, operand 1, single buffered']
    #allocation6 [shape = 's32[1]{0}', space=sflag, size = 0x4, scoped, tag = 'scoped memory for somnial_unit.1']
    #allocation7 [shape = 'u8[2048]{0}', space=vmem, size = 0x800, scoped, tag = 'input window, operand 2, single buffered']
    #allocation8 [shape = 'u8[8192]{0}', space=vmem, size = 0x2000, scoped, tag = 'output window, operand 0']
    %8 = vsyncpa [#allocation3], 0
    %s9 = scalar_lea.sflag [#allocation3], 1
    %10 = vsyncpa %s9, 0
    %11 = vsyncpa [#allocation6], 0
    %12 = vsyncpa [#allocation4], 0
    %s13 = scalar_lea.sflag [#allocation4], 1
    %14 = vsyncpa %s13, 0
    loop: start=0, step=1, limit=4
    $region2: #{somnial_unit.1} parent=1 // loop_pre_header
      _
    $region3: #{somnial_unit.1} parent=1 // loop_header
      %s16 = sphi 0, %s20
      %p17 = scmp.ge.s32.totalorder %s16, 4
      %s23 = sphi 0, %s35
      %s24 = sphi 0, %s31
      %s25 = sphi 0, %s23
      %s26 = sphi 0, %s24
      %s27 = sphi 0, %s25
      %s28 = sphi 0, %s26
      %s40 = sphi 0, %s42
      %s43 = sphi 0, %s40
      %s44 = sphi 0, %s43
      %s60 = sphi 0, %s44
      %s64 = sphi 0, %s64
      %s66 = sphi 0, %s64
      %s67 = sphi 0, %s66
      %s81 = sphi 0, %s67
      %s85 = sphi 0, %s85
      %s87 = sphi 0, %s85
      %s88 = sphi 0, %s87
      %s102 = sphi 0, %s88
      %s110 = sphi 0, %s112
      %s113 = sphi 0, %s110
      %s114 = sphi 0, %s113
      %s130 = sphi 0, %s114
    $region4: #{somnial_unit.1} parent=1 // loop_header_branch
      %19 = sbr.rel (%p17) target = $region8
    $region5: #{somnial_unit.1} parent=1 // loop_body
      %s21 = ssub.s32 %s16, 1
      %s22 = ssub.s32 %s16, 2
      %s29 = sadd.s32 1, %s24
      %p30 = scmp.ge.s32.totalorder %s29, 1
      %s31 = scalar_select %p30, 0, %s29
      %s32 = sadd.s32 1, %s23
      %s33 = scalar_select %p30, %s32, %s23
      %p34 = scmp.ge.s32.totalorder %s33, 2
      %s35 = scalar_select %p34, 0, %s33
      %s36 = ssub.s32 %s23, %s35
      %s37 = ssub.s32 %s24, %s31
      %s38 = sor.u32 %s36, %s37
      %p39 = scmp.eq.s32.totalorder %s38, 0
      %s41 = sadd.s32 %s40, 1
      %s42 = scalar_select %p39, %s40, %s41
      %p45 = pneg %p39
      %p46 = scmp.eq.s32.totalorder %s16, 1
      %p47 = por %p45, %p46
      %p48 = scmp.ne.s32.totalorder %s40, %s43
      %p49 = scmp.eq.s32.totalorder %s16, 0
      %p50 = por %p48, %p49
      %p51 = scmp.ne.s32.totalorder %s40, %s43
      %p52 = scmp.eq.s32.totalorder %s21, 1
      %p53 = por %p51, %p52
      %p54 = scmp.ne.s32.totalorder %s43, %s44
      %p55 = scmp.eq.s32.totalorder %s21, 0
      %p56 = por %p54, %p55
      %p57 = scmp.ne.s32.totalorder %s43, %s44
      %p58 = scmp.eq.s32.totalorder %s22, 1
      %p59 = por %p57, %p58
      %p61 = scmp.ne.s32.totalorder %s44, %s60
      %p62 = scmp.eq.s32.totalorder %s22, 0
      %p63 = por %p61, %p62
      %s65 = sadd.s32 %s64, 1
      %p68 = scmp.eq.s32.totalorder %s16, 1
      %p69 = scmp.ne.s32.totalorder %s64, %s66
      %p70 = scmp.eq.s32.totalorder %s16, 0
      %p71 = por %p69, %p70
      %p72 = scmp.ne.s32.totalorder %s64, %s66
      %p73 = scmp.eq.s32.totalorder %s21, 1
      %p74 = por %p72, %p73
      %p75 = scmp.ne.s32.totalorder %s66, %s67
      %p76 = scmp.eq.s32.totalorder %s21, 0
      %p77 = por %p75, %p76
      %p78 = scmp.ne.s32.totalorder %s66, %s67
      %p79 = scmp.eq.s32.totalorder %s22, 1
      %p80 = por %p78, %p79
      %p82 = scmp.ne.s32.totalorder %s67, %s81
      %p83 = scmp.eq.s32.totalorder %s22, 0
      %p84 = por %p82, %p83
      %s86 = sadd.s32 %s85, 1
      %p89 = scmp.eq.s32.totalorder %s16, 1
      %p90 = scmp.ne.s32.totalorder %s85, %s87
      %p91 = scmp.eq.s32.totalorder %s16, 0
      %p92 = por %p90, %p91
      %p93 = scmp.ne.s32.totalorder %s85, %s87
      %p94 = scmp.eq.s32.totalorder %s21, 1
      %p95 = por %p93, %p94
      %p96 = scmp.ne.s32.totalorder %s87, %s88
      %p97 = scmp.eq.s32.totalorder %s21, 0
      %p98 = por %p96, %p97
      %p99 = scmp.ne.s32.totalorder %s87, %s88
      %p100 = scmp.eq.s32.totalorder %s22, 1
      %p101 = por %p99, %p100
      %p103 = scmp.ne.s32.totalorder %s88, %s102
      %p104 = scmp.eq.s32.totalorder %s22, 0
      %p105 = por %p103, %p104
      %s106 = ssub.s32 %s23, %s35
      %s107 = ssub.s32 %s24, %s31
      %s108 = sor.u32 %s106, %s107
      %p109 = scmp.eq.s32.totalorder %s108, 0
      %s111 = sadd.s32 %s110, 1
      %s112 = scalar_select %p109, %s110, %s111
      %p115 = pneg %p109
      %p116 = scmp.eq.s32.totalorder %s16, 1
      %p117 = por %p115, %p116
      %p118 = scmp.ne.s32.totalorder %s110, %s113
      %p119 = scmp.eq.s32.totalorder %s16, 0
      %p120 = por %p118, %p119
      %p121 = scmp.ne.s32.totalorder %s110, %s113
      %p122 = scmp.eq.s32.totalorder %s21, 1
      %p123 = por %p121, %p122
      %p124 = scmp.ne.s32.totalorder %s113, %s114
      %p125 = scmp.eq.s32.totalorder %s21, 0
      %p126 = por %p124, %p125
      %p127 = scmp.ne.s32.totalorder %s113, %s114
      %p128 = scmp.eq.s32.totalorder %s22, 1
      %p129 = por %p127, %p128
      %p131 = scmp.ne.s32.totalorder %s114, %s130
      %p132 = scmp.eq.s32.totalorder %s22, 0
      %p133 = por %p131, %p132
      %p134 = scmp.le.s32.totalorder 1, %s16
      %p135 = scmp.lt.s32.totalorder %s16, 3
      %p136 = pnand %p134, %p135
      %p137 = pneg %p136
      // Predicated region
      $region9: #{somnial_unit.1} parent=5 // pred_check
        _
      $region10: #{somnial_unit.1} parent=5 // pred_check_branch
        %139 = sbr.rel (%p136) target = $region12
      $region11: #{somnial_unit.1} parent=5 // pred_region
        %s140 = ssub.s32 %s16, 1
        // Predicated region
        $region13: #{somnial_unit.1} parent=11 // pred_check
          %p141 = pneg %p77
        $region14: #{somnial_unit.1} parent=11 // pred_check_branch
          %143 = sbr.rel (%p141) target = $region16
        $region15: #{somnial_unit.1} parent=11 // pred_region
          %s145 = ssub.s32 64, 64
          %146 = vsyncadd [#allocation6], %s145
          %s148 = sshll.u32 [#allocation5], 4
          %s149 = int_to_ptr.vmem [resolvable:$true] %s148
          %151 = dma.hbm_to_vmem [thread:$0]  %s1, 64, %s149, [#allocation6]
        $region16: #{somnial_unit.1} parent=11 // pred_fallthru
          _
        // Predicated region
        $region17: #{somnial_unit.1} parent=11 // pred_check
          %p152 = pneg %p98
        $region18: #{somnial_unit.1} parent=11 // pred_check_branch
          %154 = sbr.rel (%p152) target = $region20
        $region19: #{somnial_unit.1} parent=11 // pred_region
          %s156 = ssub.s32 64, 64
          %157 = vsyncadd [#allocation6], %s156
          %s159 = sshll.u32 [#allocation7], 4
          %s160 = int_to_ptr.vmem [resolvable:$true] %s159
          %162 = dma.hbm_to_vmem [thread:$0]  %s2, 64, %s160, [#allocation6]
        $region20: #{somnial_unit.1} parent=11 // pred_fallthru
          _
      $region12: #{somnial_unit.1} parent=5 // pred_fallthru
        _
      %p163 = scmp.lt.s32.totalorder %s16, 2
      // Predicated region
      $region21: #{somnial_unit.1} parent=5 // pred_check
        %p164 = pneg %p163
      $region22: #{somnial_unit.1} parent=5 // pred_check_branch
        %166 = sbr.rel (%p164) target = $region24
      $region23: #{somnial_unit.1} parent=5 // pred_region
        // Predicated region
        $region25: #{somnial_unit.1} parent=23 // pred_check
          %p167 = pneg %p50
        $region26: #{somnial_unit.1} parent=23 // pred_check_branch
          %169 = sbr.rel (%p167) target = $region28
        $region27: #{somnial_unit.1} parent=23 // pred_region
          %s170 = sand.u32 %s40, 1
          %s171 = scalar_lea.sflag [#allocation3], %s170
          %s172 = sand.u32 %s40, 1
          %s173 = smul.addr %s172, 8
          %s174 = scalar_lea.vmem [#allocation2], %s173
          %s175 = smul.u32 2, %s24
          %s177 = ssub.s32 128, 128
          %178 = vsyncadd %s171, %s177
          %s179 = smul.addr %s23, 2
          %s180 = sadd.s32 %s175, %s179
          %s181 = smul.addr %s180, 64
          %s182 = scalar_lea.hbm %s0, %s181
          %s184 = sshll.u32 %s174, 4
          %s185 = int_to_ptr.vmem [resolvable:$true] %s184
          %187 = dma.hbm_to_vmem [thread:$0]  %s182, 128, %s185, %s171
        $region28: #{somnial_unit.1} parent=23 // pred_fallthru
          _
      $region24: #{somnial_unit.1} parent=5 // pred_fallthru
        _
      %p188 = scmp.le.s32.totalorder 1, %s16
      %p189 = scmp.lt.s32.totalorder %s16, 3
      %p190 = pnand %p188, %p189
      %p191 = pneg %p190
      // Predicated region
      $region29: #{somnial_unit.1} parent=5 // pred_check
        _
      $region30: #{somnial_unit.1} parent=5 // pred_check_branch
        %193 = sbr.rel (%p190) target = $region32
      $region31: #{somnial_unit.1} parent=5 // pred_region
        %s194 = ssub.s32 %s16, 1
        %s195 = sand.u32 %s43, 1
        %s196 = scalar_lea.sflag [#allocation3], %s195
        %s197 = sand.u32 %s43, 1
        %s198 = smul.addr %s197, 8
        %s199 = scalar_lea.vmem [#allocation2], %s198
        // Predicated region
        $region33: #{somnial_unit.1} parent=31 // pred_check
          %p200 = pneg %p56
        $region34: #{somnial_unit.1} parent=31 // pred_check_branch
          %202 = sbr.rel (%p200) target = $region36
        $region35: #{somnial_unit.1} parent=31 // pred_region
          %203 = dma.done %s196, 128
        $region36: #{somnial_unit.1} parent=31 // pred_fallthru
          _
        // Predicated region
        $region37: #{somnial_unit.1} parent=31 // pred_check
          %p204 = pneg %p77
        $region38: #{somnial_unit.1} parent=31 // pred_check_branch
          %206 = sbr.rel (%p204) target = $region40
        $region39: #{somnial_unit.1} parent=31 // pred_region
          %207 = dma.done [#allocation6], 64
        $region40: #{somnial_unit.1} parent=31 // pred_fallthru
          _
        // Predicated region
        $region41: #{somnial_unit.1} parent=31 // pred_check
          %p208 = pneg %p98
        $region42: #{somnial_unit.1} parent=31 // pred_check_branch
          %210 = sbr.rel (%p208) target = $region44
        $region43: #{somnial_unit.1} parent=31 // pred_region
          %211 = dma.done [#allocation6], 64
        $region44: #{somnial_unit.1} parent=31 // pred_fallthru
          _
        %s212 = sand.u32 %s43, 1
        %s213 = scalar_lea.sflag [#allocation3], %s212
        %s214 = sand.u32 %s43, 1
        %s215 = smul.addr %s214, 8
        %s216 = scalar_lea.vmem [#allocation2], %s215
        %p217 = pneg %p56
        %p218 = pneg %p53
        %p219 = pneg %p77
        %p220 = pneg %p74
        %p221 = pneg %p98
        %p222 = pneg %p95
        %p223 = pneg %p126
        %p224 = pneg %p123
        %s225 = sand.u32 %s113, 1
        %s226 = scalar_lea.sflag [#allocation4], %s225
        %s227 = sand.u32 %s113, 1
        %s228 = smul.addr %s227, 8
        %s229 = scalar_lea.vmem [#allocation8], %s228
        %s230 = smul.u32 2, %s26
        %s231 = smul.u32 2, %s26
        %v232 = vld [vmem:[%s199] sm:$0xff]
        %v233 = vld [vmem:[#allocation7] sm:$0xf]
        %v234 = vld [vmem:[#allocation5] sm:$0xf]
        %236 = vset.pattern.permute.xlu0 0
        %237 = vperm.xlu0 %236, %v233
        %v238 = vpop.permute.xlu0 %237
        %v240 = vadd.f32 %v238, 0.0
        %242 = vset.pattern.permute.xlu0 0
        %243 = vperm.xlu0 %242, %v234
        %v244 = vpop.permute.xlu0 %243
        %v247 = vlaneseq
        %v248 = vshrl.u32 %v247, 7
        %v249 = vsub.s32 0, %v248
        %v250 = vrot.slane %v232, %v249
        %v251 = vlaneseq
        %v252 = vshrl.u32 %v251, 7
        %v253 = vsub.s32 4, %v252
        %v254 = vrot.slane %v232, %v253
        %v257 = vlaneseq
        %v258 = vshrl.u32 %v257, 7
        %v259 = vsub.s32 0, %v258
        %v260 = vrot.slane %v250, %v259
        %v261 = vlaneseq
        %v262 = vshrl.u32 %v261, 7
        %v263 = vsub.s32 0, %v262
        %v264 = vrot.slane %v254, %v263
        %v265 = vmul.f32 %v244, %v260
        %v266 = vmul.f32 %v244, %v264
        %v267 = vadd.f32 %v240, %v265
        %v268 = vadd.f32 %v240, %v266
        %269 = vset.pattern.permute.xlu0 1
        %270 = vperm.xlu0 %269, %v234
        %v271 = vpop.permute.xlu0 %270
        %v273 = vlaneseq
        %v274 = vshrl.u32 %v273, 7
        %v275 = vsub.s32 1, %v274
        %v276 = vrot.slane %v232, %v275
        %v277 = vlaneseq
        %v278 = vshrl.u32 %v277, 7
        %v279 = vsub.s32 5, %v278
        %v280 = vrot.slane %v232, %v279
        %v283 = vlaneseq
        %v284 = vshrl.u32 %v283, 7
        %v285 = vsub.s32 1, %v284
        %v286 = vrot.slane %v276, %v285
        %v287 = vlaneseq
        %v288 = vshrl.u32 %v287, 7
        %v289 = vsub.s32 1, %v288
        %v290 = vrot.slane %v280, %v289
        %v291 = vmul.f32 %v271, %v286
        %v292 = vmul.f32 %v271, %v290
        %v293 = vadd.f32 %v267, %v291
        %v294 = vadd.f32 %v268, %v292
        %295 = vset.pattern.permute.xlu0 2
        %296 = vperm.xlu0 %295, %v234
        %v297 = vpop.permute.xlu0 %296
        %v299 = vlaneseq
        %v300 = vshrl.u32 %v299, 7
        %v301 = vsub.s32 2, %v300
        %v302 = vrot.slane %v232, %v301
        %v303 = vlaneseq
        %v304 = vshrl.u32 %v303, 7
        %v305 = vsub.s32 6, %v304
        %v306 = vrot.slane %v232, %v305
        %v309 = vlaneseq
        %v310 = vshrl.u32 %v309, 7
        %v311 = vsub.s32 2, %v310
        %v312 = vrot.slane %v302, %v311
        %v313 = vlaneseq
        %v314 = vshrl.u32 %v313, 7
        %v315 = vsub.s32 2, %v314
        %v316 = vrot.slane %v306, %v315
        %v317 = vmul.f32 %v297, %v312
        %v318 = vmul.f32 %v297, %v316
        %v319 = vadd.f32 %v293, %v317
        %v320 = vadd.f32 %v294, %v318
        %321 = vset.pattern.permute.xlu0 3
        %322 = vperm.xlu0 %321, %v234
        %v323 = vpop.permute.xlu0 %322
        %v325 = vlaneseq
        %v326 = vshrl.u32 %v325, 7
        %v327 = vsub.s32 3, %v326
        %v328 = vrot.slane %v232, %v327
        %v329 = vlaneseq
        %v330 = vshrl.u32 %v329, 7
        %v331 = vsub.s32 7, %v330
        %v332 = vrot.slane %v232, %v331
        %v335 = vlaneseq
        %v336 = vshrl.u32 %v335, 7
        %v337 = vsub.s32 3, %v336
        %v338 = vrot.slane %v328, %v337
        %v339 = vlaneseq
        %v340 = vshrl.u32 %v339, 7
        %v341 = vsub.s32 3, %v340
        %v342 = vrot.slane %v332, %v341
        %v343 = vmul.f32 %v323, %v338
        %v344 = vmul.f32 %v323, %v342
        %v345 = vadd.f32 %v319, %v343
        %v346 = vadd.f32 %v320, %v344
        %v347 = vmul.f32 %v232, %v232
        %v349 = vcombine.high %v347, %v347
        %vm351 = vcmask 1043456
        %v352 = vsel %vm351, %v347, 0.0
        %v353 = vrot.slane %v352, 4
        %v354 = vadd.f32 %v352, %v353
        %v355 = vrot.slane %v354, 2
        %v356 = vadd.f32 %v354, %v355
        %v357 = vrot.slane %v356, 1
        %v358 = vadd.f32 %v356, %v357
        %v359 = vsel %vm351, %v349, 0.0
        %v360 = vrot.slane %v359, 4
        %v361 = vadd.f32 %v359, %v360
        %v362 = vrot.slane %v361, 2
        %v363 = vadd.f32 %v361, %v362
        %v364 = vrot.slane %v363, 1
        %v365 = vadd.f32 %v363, %v364
        %v366 = vmul.f32 %v345, %v345
        %v367 = vmul.f32 %v346, %v346
        %v368 = vsel %vm351, %v366, 0.0
        %v369 = vrot.slane %v368, 4
        %v370 = vadd.f32 %v368, %v369
        %v371 = vrot.slane %v370, 2
        %v372 = vadd.f32 %v370, %v371
        %v373 = vrot.slane %v372, 1
        %v374 = vadd.f32 %v372, %v373
        %v375 = vsel %vm351, %v367, 0.0
        %v376 = vrot.slane %v375, 4
        %v377 = vadd.f32 %v375, %v376
        %v378 = vrot.slane %v377, 2
        %v379 = vadd.f32 %v377, %v378
        %v380 = vrot.slane %v379, 1
        %v381 = vadd.f32 %v379, %v380
        %v384 = vcombine.low %v345, %v346
        %v386 = vmul.f32 %v232, %v384
        %v388 = vcombine.high %v386, %v386
        %v390 = vsel %vm351, %v386, 0.0
        %v391 = vrot.slane %v390, 4
        %v392 = vadd.f32 %v390, %v391
        %v393 = vrot.slane %v392, 2
        %v394 = vadd.f32 %v392, %v393
        %v395 = vrot.slane %v394, 1
        %v396 = vadd.f32 %v394, %v395
        %v397 = vsel %vm351, %v388, 0.0
        %v398 = vrot.slane %v397, 4
        %v399 = vadd.f32 %v397, %v398
        %v400 = vrot.slane %v399, 2
        %v401 = vadd.f32 %v399, %v400
        %v402 = vrot.slane %v401, 1
        %v403 = vadd.f32 %v401, %v402
        %v404 = vrsqrt.pop %v358
        %v405 = vmul.f32 %v358, %v404
        %vm406 = vcmp.eq.f32.partialorder %v358, inf
        %v407 = vsel %vm406, %v358, %v405
        %vm408 = vcmp.eq.f32.partialorder %v358, 0.0
        %v409 = vand.u32 %v358, 2147483648
        %v410 = vsel %vm408, %v409, %v407
        %v411 = vrsqrt.pop %v365
        %v412 = vmul.f32 %v365, %v411
        %vm413 = vcmp.eq.f32.partialorder %v365, inf
        %v414 = vsel %vm413, %v365, %v412
        %vm415 = vcmp.eq.f32.partialorder %v365, 0.0
        %v416 = vand.u32 %v365, 2147483648
        %v417 = vsel %vm415, %v416, %v414
        %v418 = vmax.f32 %v410, 1e-12
        %v419 = vmax.f32 %v417, 1e-12
        %v420 = vrsqrt.pop %v374
        %v421 = vmul.f32 %v374, %v420
        %vm422 = vcmp.eq.f32.partialorder %v374, inf
        %v423 = vsel %vm422, %v374, %v421
        %vm424 = vcmp.eq.f32.partialorder %v374, 0.0
        %v425 = vand.u32 %v374, 2147483648
        %v426 = vsel %vm424, %v425, %v423
        %v427 = vrsqrt.pop %v381
        %v428 = vmul.f32 %v381, %v427
        %vm429 = vcmp.eq.f32.partialorder %v381, inf
        %v430 = vsel %vm429, %v381, %v428
        %vm431 = vcmp.eq.f32.partialorder %v381, 0.0
        %v432 = vand.u32 %v381, 2147483648
        %v433 = vsel %vm431, %v432, %v430
        %v434 = vmax.f32 %v426, 1e-12
        %v435 = vmax.f32 %v433, 1e-12
        %v436 = vmul.f32 %v418, %v434
        %v437 = vmul.f32 %v419, %v435
        %v438 = vrcp.pop %v436
        %v439 = vrcp.pop %v437
        %v440 = vmul.f32 %v396, %v438
        %v441 = vmul.f32 %v403, %v439
        %v442 = vxor.u32 %v440, 2147483648
        %v443 = vxor.u32 %v441, 2147483648
        %v444 = vmul.f32 %v442, 1.442695
        %v445 = vpow.pop %v444
        %v446 = vmul.f32 %v443, 1.442695
        %v447 = vpow.pop %v446
        %v448 = vadd.f32 %v445, 1.0
        %v449 = vadd.f32 %v447, 1.0
        %v450 = vrcp.pop %v448
        %v451 = vmul.f32 1.0, %v450
        %v452 = vrcp.pop %v449
        %v453 = vmul.f32 1.0, %v452
        %v454 = vcombine.high %v232, %v232
        %v456 = vsub.f32 %v345, %v232
        %v457 = vsub.f32 %v346, %v454
        %v458 = vmul.f32 %v451, %v456
        %v459 = vmul.f32 %v453, %v457
        %v462 = vcombine.low %v458, %v459
        %v464 = vadd.f32 %v232, %v462
        %465 = vst [vmem:[%s229] sm:$0xff] %v464
        %s466 = sand.u32 %s113, 1
        %s467 = scalar_lea.sflag [#allocation4], %s466
        %s468 = sand.u32 %s113, 1
        %s469 = smul.addr %s468, 8
        %s470 = scalar_lea.vmem [#allocation8], %s469
        // Predicated region
        $region45: #{somnial_unit.1} parent=31 // pred_check
          %p471 = pneg %p123
        $region46: #{somnial_unit.1} parent=31 // pred_check_branch
          %473 = sbr.rel (%p471) target = $region48
        $region47: #{somnial_unit.1} parent=31 // pred_region
          %s474 = smul.u32 2, %s26
          %s476 = ssub.s32 128, 128
          %477 = vsyncadd %s467, %s476
          %s478 = smul.addr %s25, 2
          %s479 = sadd.s32 %s474, %s478
          %s480 = smul.addr %s479, 64
          %s481 = scalar_lea.hbm %s3, %s480
          %s483 = sshll.u32 %s470, 4
          %s484 = int_to_ptr.vmem [resolvable:$true] %s483
          %486 = dma.vmem_to_hbm [thread:$0]  %s484, 128, %s481, %s467
        $region48: #{somnial_unit.1} parent=31 // pred_fallthru
          _
      $region32: #{somnial_unit.1} parent=5 // pred_fallthru
        _
      %p487 = scmp.le.s32.totalorder 2, %s16
      // Predicated region
      $region49: #{somnial_unit.1} parent=5 // pred_check
        %p488 = pneg %p487
      $region50: #{somnial_unit.1} parent=5 // pred_check_branch
        %490 = sbr.rel (%p488) target = $region52
      $region51: #{somnial_unit.1} parent=5 // pred_region
        %s491 = ssub.s32 %s16, 2
        // Predicated region
        $region53: #{somnial_unit.1} parent=51 // pred_check
          %p492 = pneg %p129
        $region54: #{somnial_unit.1} parent=51 // pred_check_branch
          %494 = sbr.rel (%p492) target = $region56
        $region55: #{somnial_unit.1} parent=51 // pred_region
          %s495 = sand.u32 %s114, 1
          %s496 = scalar_lea.sflag [#allocation4], %s495
          %s497 = sand.u32 %s114, 1
          %s498 = smul.addr %s497, 8
          %s499 = scalar_lea.vmem [#allocation8], %s498
          %500 = dma.done %s496, 128
        $region56: #{somnial_unit.1} parent=51 // pred_fallthru
          _
      $region52: #{somnial_unit.1} parent=5 // pred_fallthru
        _
    $region6: #{somnial_unit.1} parent=1 // loop_footer
      %s20 = sadd.s32 1, %s16
    $region7: #{somnial_unit.1} parent=1 // loop_footer_branch
      %15 = sbr.rel target = $region3
    $region8: #{somnial_unit.1} parent=1 // loop_exit
      _
    %501 = vsyncpa [#allocation3], 1
    %s502 = scalar_lea.sflag [#allocation3], 1
    %503 = vsyncpa %s502, 1
    %504 = vsyncpa [#allocation6], 1
    %505 = vsyncpa [#allocation4], 1
    %s506 = scalar_lea.sflag [#allocation4], 1
    %507 = vsyncpa %s506, 1

</llo_original>
